<compile_context>
chip_gen: v7x
topology: tpu7x:2x2x1
jax: 0.10.0
libtpu: 0.0.40
codegen_flags: <defaults>
</compile_context>

<pallas_src>
import jax
import jax.numpy as jnp
from jax.experimental import pallas as pl
from jax.experimental.pallas import tpu as pltpu


def _dense_expander_kernel(x_ref, w_ref, b_ref, o_ref):
    # x_ref: (TB, F); w_ref/b_ref: (1, S*F) lane-dense broadcasts of W[s]/bias[s]
    # o_ref: (TB, S*F) with flat index s*F + f.
    x = x_ref[...]                                # (TB, F)
    s = o_ref.shape[-1] // x.shape[-1]
    x_tiled = jnp.tile(x, (1, s))                 # (TB, S*F): x replicated per s
    o_ref[...] = x_tiled * w_ref[...] + b_ref[...]


def _choose_tb(batch, row_bytes, vmem_budget_bytes=32 << 20):
    """Pick a batch tile: big lane-dense output tiles, VMEM-safe with double
    buffering, and >= 2 grid steps so dual-TC chips can split the work."""
    if batch <= 8:
        return batch
    # Per grid step VMEM ~= 2 * tb * row_bytes (double-buffered output) plus
    # small inputs/constants; leave 2x headroom inside the scoped limit.
    target_tile_bytes = min(4 << 20, vmem_budget_bytes // 8)
    tb = max(8, target_tile_bytes // max(row_bytes, 1))
    tb = min(tb, max(8, (batch // 2 // 8) * 8))   # keep at least ~2 grid steps
    tb = (tb // 8) * 8                            # sublane-friendly multiple of 8
    return int(max(8, min(tb, batch)))


def dense_expander(x, weight, bias, *, tb=None):
    """x: (B, F); weight: (S, 1); bias: (S,). Returns (B, S, F)."""
    B, F = x.shape
    S = weight.shape[0]
    SF = S * F
    dtype = x.dtype
    elem = jnp.dtype(dtype).itemsize
    vmem_limit = 32 * 1024 * 1024

    if tb is None:
        tb = _choose_tb(B, SF * elem, vmem_budget_bytes=vmem_limit)
    grid_b = pl.cdiv(B, tb)

    # Lane-dense constants (built once, outside the kernel, ~S*F elements each):
    #   w_flat[0, s*F + f] = W[s, 0],  b_flat[0, s*F + f] = bias[s]
    w_flat = jnp.broadcast_to(weight.astype(dtype).reshape(S, 1), (S, F)).reshape(1, SF)
    b_flat = jnp.broadcast_to(bias.astype(dtype).reshape(S, 1), (S, F)).reshape(1, SF)

    out_flat = pl.pallas_call(
        _dense_expander_kernel,
        out_shape=jax.ShapeDtypeStruct((B, SF), dtype),
        grid_spec=pltpu.PrefetchScalarGridSpec(
            num_scalar_prefetch=0,
            grid=(grid_b,),
            in_specs=[
                pl.BlockSpec((tb, F), lambda i: (i, 0)),
                pl.BlockSpec((1, SF), lambda i: (0, 0)),
                pl.BlockSpec((1, SF), lambda i: (0, 0)),
            ],
            out_specs=pl.BlockSpec((tb, SF), lambda i: (i, 0)),
        ),
        compiler_params=pltpu.CompilerParams(
            dimension_semantics=("parallel",),
            vmem_limit_bytes=vmem_limit,
        ),
        cost_estimate=pl.CostEstimate(
            flops=2 * B * SF,
            transcendentals=0,
            bytes_accessed=elem * (B * F + 2 * SF + B * SF),
        ),
    )(x, w_flat, b_flat)

    # Free trailing-dim split: (B, S*F) -> (B, S, F).
    return out_flat.reshape(B, S, F)


def _reference(x, weight, bias):
    # Pure-JAX reference of the PyTorch forward.
    y = x[:, :, None] * weight[:, 0][None, None, :] + bias[None, None, :]  # (B, F, S)
    return jnp.transpose(y, (0, 2, 1))                                     # (B, S, F)


if __name__ == "__main__":
    # Module config: seq_len=8 (d_model / low_dim are unused by forward).
    seq_len = 8
    B, F = 2, 32

    key = jax.random.PRNGKey(0)
    kx, kw, kb = jax.random.split(key, 3)

    # nn.Linear(1, seq_len): weight (seq_len, 1), bias (seq_len,)
    weight = jax.random.normal(kw, (seq_len, 1), dtype=jnp.float32) * 0.5
    bias = jax.random.normal(kb, (seq_len,), dtype=jnp.float32) * 0.1
    x = jax.random.normal(kx, (B, F), dtype=jnp.float32)

    out = dense_expander(x, weight, bias)
    out = jax.block_until_ready(out)

    ref = _reference(x, weight, bias)
    assert out.shape == (B, seq_len, F), out.shape
    assert jnp.allclose(out, ref, atol=1e-5, rtol=1e-5)

    # Second check exercising the multi-step batch-tiled grid (B=16 -> 2 steps,
    # one per TensorCore on dual-TC chips).
    B2 = 16
    x2 = jax.random.normal(jax.random.PRNGKey(1), (B2, F), dtype=jnp.float32)
    out2 = jax.block_until_ready(dense_expander(x2, weight, bias))
    assert out2.shape == (B2, seq_len, F), out2.shape
    assert jnp.allclose(out2, _reference(x2, weight, bias), atol=1e-5, rtol=1e-5)

    # Third check: non-multiple-of-tile batch to exercise the padded last block.
    B3 = 20
    x3 = jax.random.normal(jax.random.PRNGKey(2), (B3, F), dtype=jnp.float32)
    out3 = jax.block_until_ready(dense_expander(x3, weight, bias))
    assert out3.shape == (B3, seq_len, F), out3.shape
    assert jnp.allclose(out3, _reference(x3, weight, bias), atol=1e-5, rtol=1e-5)

    print("KERNEL_OK")
</pallas_src>

<mosaic_0001>
module attributes {stable_mosaic.version = 11 : i64} {
  func.func @_dense_expander_kernel(%arg0: i32, %arg1: memref<2x32xf32, #tpu.memory_space<vmem>>, %arg2: memref<1x256xf32, #tpu.memory_space<vmem>>, %arg3: memref<1x256xf32, #tpu.memory_space<vmem>>, %arg4: memref<2x256xf32, #tpu.memory_space<vmem>>) attributes {dimension_semantics = [#tpu.dimension_semantics<parallel>], iteration_bounds = array<i64: 1>, scalar_prefetch = 0 : i64, scratch_operands = 0 : i64, tpu.core_type = #tpu.core_type<tc>, window_params = [{transform_indices = @transform_0, window_bounds = array<i64: 2, 32>}, {pipeline_mode = #tpu.pipeline_mode<synchronous>, transform_indices = @transform_1, window_bounds = array<i64: 1, 256>}, {pipeline_mode = #tpu.pipeline_mode<synchronous>, transform_indices = @transform_2, window_bounds = array<i64: 1, 256>}, {transform_indices = @transform_3, window_bounds = array<i64: 2, 256>}]} {
    %c0 = arith.constant 0 : index
    %c0_0 = arith.constant 0 : index
    %0 = vector.load %arg1[%c0, %c0_0] : memref<2x32xf32, #tpu.memory_space<vmem>>, vector<2x32xf32>
    %1 = tpu.concatenate %0, %0, %0, %0, %0, %0, %0, %0 in 1 : vector<2x32xf32>, vector<2x32xf32>, vector<2x32xf32>, vector<2x32xf32>, vector<2x32xf32>, vector<2x32xf32>, vector<2x32xf32>, vector<2x32xf32> -> vector<2x256xf32>
    %c0_1 = arith.constant 0 : index
    %c0_2 = arith.constant 0 : index
    %2 = vector.load %arg2[%c0_1, %c0_2] : memref<1x256xf32, #tpu.memory_space<vmem>>, vector<1x256xf32>
    %3 = vector.broadcast %2 : vector<1x256xf32> to vector<2x256xf32>
    %4 = arith.mulf %1, %3 : vector<2x256xf32>
    %c0_3 = arith.constant 0 : index
    %c0_4 = arith.constant 0 : index
    %5 = vector.load %arg3[%c0_3, %c0_4] : memref<1x256xf32, #tpu.memory_space<vmem>>, vector<1x256xf32>
    %6 = vector.broadcast %5 : vector<1x256xf32> to vector<2x256xf32>
    %7 = arith.addf %4, %6 : vector<2x256xf32>
    %c0_5 = arith.constant 0 : index
    %c0_6 = arith.constant 0 : index
    %8 = vector.load %arg4[%c0_5, %c0_6] : memref<2x256xf32, #tpu.memory_space<vmem>>, vector<2x256xf32>
    tpu.vector_store %arg4[%c0_5, %c0_6], %7 {strides = array<i32>} : memref<2x256xf32, #tpu.memory_space<vmem>>, vector<2x256xf32>,
    return
  }
  func.func @transform_0(%arg0: i32) -> (i32, i32) {
    %c0_i32 = arith.constant 0 : i32
    %c0_i32_0 = arith.constant 0 : i32
    return %arg0, %c0_i32 : i32, i32
  }
  func.func @transform_1(%arg0: i32) -> (i32, i32) {
    %c0_i32 = arith.constant 0 : i32
    %c0_i32_0 = arith.constant 0 : i32
    %c0_i32_1 = arith.constant 0 : i32
    return %c0_i32, %c0_i32_0 : i32, i32
  }
  func.func @transform_2(%arg0: i32) -> (i32, i32) {
    %c0_i32 = arith.constant 0 : i32
    %c0_i32_0 = arith.constant 0 : i32
    %c0_i32_1 = arith.constant 0 : i32
    return %c0_i32, %c0_i32_0 : i32, i32
  }
  func.func @transform_3(%arg0: i32) -> (i32, i32) {
    %c0_i32 = arith.constant 0 : i32
    %c0_i32_0 = arith.constant 0 : i32
    return %arg0, %c0_i32 : i32, i32
  }
}

</mosaic_0001>

<llo_original>
// kernel: tpu_custom_call.1
$region0: #{tpu_custom_call.1}
  #allocation0 [shape = 'u32[]', space=smem, size = 0x4, offset = 0x4, fixed_abs, tag = 'smem constant byte address 0x4 - core index']
  #allocation1 [shape = 'u32[144,128]{1,0:T(1,128)}', space=vmem, size = 0x12000, scoped, tag = 'internal scratch']
  %s0 = inlined_call_operand.hbm [shape: f32[2,32], index: 0, kind: input, shape index: {}]
  %s1 = inlined_call_operand.vmem [shape: f32[1,256], index: 1, kind: input, shape index: {}]
  %s2 = inlined_call_operand.vmem [shape: f32[1,256], index: 2, kind: input, shape index: {}]
  %s3 = inlined_call_operand.hbm [shape: f32[2,256], index: 3, kind: output, shape index: {}]
  %s4 = sld [smem:[#allocation0]]
  $region26: #{tpu_custom_call.1} parent=0
    _
  %s6 = ssub.s32 1, %s4
  %s7 = scalar_select 0, %s6, %s4
  $region1: #{tpu_custom_call.1} parent=0
    #allocation2 [shape = 'u8[1024]{0}', space=vmem, size = 0x400, scoped, tag = 'input window, operand 0, single buffered']
    #allocation3 [shape = 's32[1]{0}', space=sflag, size = 0x4, scoped, tag = 'scoped memory for tpu_custom_call.1']
    #allocation4 [shape = 's32[1]{0}', space=sflag, size = 0x4, scoped, tag = 'scoped memory for tpu_custom_call.1']
    #allocation5 [shape = 'u8[2048]{0}', space=vmem, size = 0x800, scoped, tag = 'output window, operand 0, single buffered']
    %8 = vsyncpa [#allocation3], 0
    %9 = vsyncpa [#allocation4], 0
    // Predicated region
    $region2: #{tpu_custom_call.1} parent=1 // pred_check
      _
    $region3: #{tpu_custom_call.1} parent=1 // pred_check_branch
      %11 = sbr.rel (0) target = $region5
    $region4: #{tpu_custom_call.1} parent=1 // pred_region
      %s13 = ssub.s32 32, 32
      %14 = vsyncadd [#allocation3], %s13
      %s16 = sshll.u32 [#allocation2], 4
      %s17 = int_to_ptr.vmem [resolvable:$true] %s16
      %19 = dma.hbm_to_vmem [thread:$0]  %s0, 32, %s17, [#allocation3]
    $region5: #{tpu_custom_call.1} parent=1 // pred_fallthru
      _
    // Predicated region
    $region6: #{tpu_custom_call.1} parent=1 // pred_check
      _
    $region7: #{tpu_custom_call.1} parent=1 // pred_check_branch
      %21 = sbr.rel (0) target = $region9
    $region8: #{tpu_custom_call.1} parent=1 // pred_region
      _
    $region9: #{tpu_custom_call.1} parent=1 // pred_fallthru
      _
    // Predicated region
    $region10: #{tpu_custom_call.1} parent=1 // pred_check
      _
    $region11: #{tpu_custom_call.1} parent=1 // pred_check_branch
      %23 = sbr.rel (0) target = $region13
    $region12: #{tpu_custom_call.1} parent=1 // pred_region
      _
    $region13: #{tpu_custom_call.1} parent=1 // pred_fallthru
      _
    // Predicated region
    $region14: #{tpu_custom_call.1} parent=1 // pred_check
      _
    $region15: #{tpu_custom_call.1} parent=1 // pred_check_branch
      %25 = sbr.rel (0) target = $region17
    $region16: #{tpu_custom_call.1} parent=1 // pred_region
      %26 = dma.done [#allocation3], 32
    $region17: #{tpu_custom_call.1} parent=1 // pred_fallthru
      _
    %v27 = vld [vmem:[#allocation2] sm:$0x3]
    %29 = vrot.lane.b32.xlu0 %v27, 32
    %v30 = vpop.permute.xlu0 %29
    %32 = vrot.lane.b32.xlu0 %v27, 64
    %v33 = vpop.permute.xlu0 %32
    %35 = vrot.lane.b32.xlu0 %v27, 96
    %v36 = vpop.permute.xlu0 %35
    %vm38 = vcmask 261120
    %v39 = vsel %vm38, %v27, %v30
    %vm40 = vcmask 523264
    %v41 = vsel %vm40, %v39, %v33
    %vm42 = vcmask 785408
    %v43 = vsel %vm42, %v41, %v36
    %v44 = vld [vmem:[%s1] sm:$0x3]
    %v46 = vlaneseq
    %v47 = vshrl.u32 %v46, 7
    %v48 = vsub.s32 0, %v47
    %v49 = vrot.slane %v44, %v48
    %v50 = vlaneseq
    %v51 = vshrl.u32 %v50, 7
    %v52 = vsub.s32 1, %v51
    %v53 = vrot.slane %v44, %v52
    %v56 = vmul.f32 %v43, %v49
    %v57 = vmul.f32 %v43, %v53
    %v58 = vld [vmem:[%s2] sm:$0x3]
    %v60 = vlaneseq
    %v61 = vshrl.u32 %v60, 7
    %v62 = vsub.s32 0, %v61
    %v63 = vrot.slane %v58, %v62
    %v64 = vlaneseq
    %v65 = vshrl.u32 %v64, 7
    %v66 = vsub.s32 1, %v65
    %v67 = vrot.slane %v58, %v66
    %v70 = vadd.f32 %v56, %v63
    %v71 = vadd.f32 %v57, %v67
    %v74 = vcombine.low %v70, %v71
    %v76 = vunpack.c.l.s4 1983009808
    %v77 = vunpack.c.0.s8 %v76
    %v78 = vlaneseq
    %v79 = vshrl.u32 %v78, 7
    %v80 = vsub.s32 %v77, %v79
    %v81 = vrot.slane %v74, %v80
    %83 = vst [vmem:[#allocation5] sm:$0xf] %v81
    // Predicated region
    $region18: #{tpu_custom_call.1} parent=1 // pred_check
      _
    $region19: #{tpu_custom_call.1} parent=1 // pred_check_branch
      %85 = sbr.rel (0) target = $region21
    $region20: #{tpu_custom_call.1} parent=1 // pred_region
      %s87 = ssub.s32 64, 64
      %88 = vsyncadd [#allocation4], %s87
      %s90 = sshll.u32 [#allocation5], 4
      %s91 = int_to_ptr.vmem [resolvable:$true] %s90
      %93 = dma.vmem_to_hbm [thread:$0]  %s91, 64, %s3, [#allocation4]
    $region21: #{tpu_custom_call.1} parent=1 // pred_fallthru
      _
    // Predicated region
    $region22: #{tpu_custom_call.1} parent=1 // pred_check
      _
    $region23: #{tpu_custom_call.1} parent=1 // pred_check_branch
      %95 = sbr.rel (0) target = $region25
    $region24: #{tpu_custom_call.1} parent=1 // pred_region
      %96 = dma.done [#allocation4], 64
    $region25: #{tpu_custom_call.1} parent=1 // pred_fallthru
      _
    %97 = vsyncpa [#allocation3], 1
    %98 = vsyncpa [#allocation4], 1

</llo_original>
